<compile_context>
chip_gen: v7x
topology: tpu7x:2x2x1
jax: 0.10.0
libtpu: 0.0.40
codegen_flags: <defaults>
</compile_context>

<pallas_src>
import functools

import jax
import jax.numpy as jnp
from jax import lax
from jax.experimental import pallas as pl
from jax.experimental.pallas import tpu as pltpu


# ----------------------------- Pallas kernel -------------------------------
def _down_conv_kernel(xs_ref, w_ref, b_ref, o_ref, *, J, TL, WIN):
    # xs_ref : (2*C_in, Lh)        even phase stacked over odd phase of the padded input,
    #                              resident across the tile axis (one DMA per batch)
    # w_ref  : (J, C_out_pad, 2*C_in)  per-shift weights (even tap 2j over odd tap 2j+1)
    # b_ref  : (C_out_pad, 1)          bias
    # o_ref  : (C_out_pad, TL)         lane-dense output tile (NCL layout)
    i = pl.program_id(1)
    start = pl.multiple_of(i * TL, TL)          # 128-aligned lane offset into the phases

    # One aligned window load (width WIN = TL + 128, both multiples of 128).
    win = xs_ref[:, pl.ds(start, WIN)]          # (2*C_in, WIN)

    c_out_pad = o_ref.shape[0]
    acc = jnp.zeros((c_out_pad, TL), jnp.float32)

    # out[co, t] = bias[co] + sum_{k, ci} W[co, ci, k] * x_pad[ci, 2t + k]
    # With k = 2j + p (p = phase), x_pad[2t + k] == phase_p[t + j]: a lane shift by j.
    # Both phases are stacked on the contraction axis, so one matmul per shift j.
    for j in range(J):
        if j == 0:
            tap = win[:, :TL]                                   # aligned static slice
        else:
            # XLU lane rotation by j (shift WIN - j == -j mod WIN), then keep the
            # aligned first TL lanes: tap[:, t] = win[:, t + j].
            tap = pltpu.roll(win, WIN - j, axis=1)[:, :TL]      # (2*C_in, TL)
        acc = acc + jnp.dot(w_ref[j], tap, preferred_element_type=jnp.float32)

    o_ref[...] = (acc + b_ref[...]).astype(o_ref.dtype)


# ------------------------------- Down module --------------------------------
def down_forward(x, weight, bias, *, stride=2, max_tile=2048):
    """Down == Conv1d(C_in, C_out, K, stride=2, padding=(K-1)//2).

    x: (N, C_in, L) float32; weight: (C_out, C_in, K); bias: (C_out,).
    Returns (N, C_out, Lout) float32, matching torch.nn.Conv1d semantics.
    """
    assert stride == 2, "Down always downsamples by 2"
    N, C_in, L = x.shape
    C_out, c_in_w, K = weight.shape
    assert c_in_w == C_in
    pad = (K - 1) // 2
    Lout = (L + 2 * pad - K) // stride + 1

    # Output-length tile (lane axis). Must be a multiple of 128 for unmasked full-width
    # stores and for the pl.multiple_of alignment hint; big tiles amortize per-step cost.
    max_tile = max(128, (max_tile // 128) * 128)
    TL = min(max_tile, pl.cdiv(Lout, 128) * 128)
    n_tiles = pl.cdiv(Lout, TL)
    Lout_pad = n_tiles * TL
    LPAD = 128                      # look-ahead so width-WIN windows stay 128-aligned
    WIN = TL + LPAD
    Lh = Lout_pad + LPAD            # per-phase length the kernel may touch

    C_out_pad = pl.cdiv(C_out, 8) * 8
    J = (K + 1) // 2                # number of lane shifts (taps per phase)

    # --- glue: pad + stride-2 phase split + channel-stack, fused by XLA into one pass ---
    total_len = 2 * Lh
    assert total_len >= L + pad, (
        "phase buffer too short for this (L, K, stride) combination", total_len, L, pad)
    x_p = jnp.pad(x, ((0, 0), (0, 0), (pad, total_len - L - pad)))     # not materialized
    xs = jnp.concatenate([x_p[:, :, 0::2], x_p[:, :, 1::2]], axis=1)   # (N, 2*C_in, Lh)

    # Weights: taps k=2j (even phase) stacked over k=2j+1 (odd phase) on the contraction
    # axis; odd tap of the last shift is zero-padded when K is odd.
    w_k = jnp.pad(weight, ((0, C_out_pad - C_out), (0, 0), (0, 2 * J - K)))
    ws = jnp.concatenate([w_k[:, :, 0::2], w_k[:, :, 1::2]], axis=1)   # (C_out_pad, 2C_in, J)
    ws = jnp.transpose(ws, (2, 0, 1))                                  # (J, C_out_pad, 2C_in)
    b = jnp.pad(bias, (0, C_out_pad - C_out)).reshape(C_out_pad, 1)

    kernel = functools.partial(_down_conv_kernel, J=J, TL=TL, WIN=WIN)

    # --- explicit VMEM budget (resident blocks are double-buffered by the pipeline) ---
    def rup(v, m):
        return (max(v, 1) + m - 1) // m * m

    vmem_need = 4 * (
        2 * rup(2 * C_in, 8) * rup(Lh, 128)            # xs block x2 buffers
        + 2 * J * rup(C_out_pad, 8) * rup(2 * C_in, 128)  # weights x2 buffers
        + 2 * rup(C_out_pad, 8) * 128                  # bias x2 buffers
        + 2 * rup(C_out_pad, 8) * TL                   # output tile x2 buffers
    )
    vmem_limit = int(min(max(vmem_need + (8 << 20), 32 << 20), 96 << 20))

    # v7x megacore: shard on batch when possible so each core DMAs unique phase blocks.
    dim_sem = ("parallel", "arbitrary") if N > 1 else ("parallel", "parallel")

    out_bytes = N * C_out_pad * Lout_pad * 4
    in_bytes = (xs.size + ws.size + b.size) * 4

    out = pl.pallas_call(
        kernel,
        out_shape=jax.ShapeDtypeStruct((N, C_out_pad, Lout_pad), x.dtype),
        grid_spec=pltpu.PrefetchScalarGridSpec(
            num_scalar_prefetch=0,
            grid=(N, n_tiles),
            in_specs=[
                # Stacked phases: full (2*C_in, Lh) block per batch, resident across tiles.
                pl.BlockSpec((None, 2 * C_in, Lh), lambda n, i: (n, 0, 0)),
                # Weights / bias: tiny, resident for the whole grid.
                pl.BlockSpec((J, C_out_pad, 2 * C_in), lambda n, i: (0, 0, 0)),
                pl.BlockSpec((C_out_pad, 1), lambda n, i: (0, 0)),
            ],
            # Lane-dense output tile, written directly in NCL layout.
            out_specs=pl.BlockSpec((None, C_out_pad, TL), lambda n, i: (n, 0, i)),
        ),
        compiler_params=pltpu.CompilerParams(
            dimension_semantics=dim_sem,
            vmem_limit_bytes=vmem_limit),
        cost_estimate=pl.CostEstimate(
            flops=2 * N * Lout_pad * C_out_pad * 2 * C_in * J,
            transcendentals=0,
            bytes_accessed=in_bytes + out_bytes),
    )(xs, ws, b)

    # Drop channel / length padding (no transpose needed).
    return out[:, :C_out, :Lout]


# ---------------------------------- main -------------------------------------
if __name__ == "__main__":
    key = jax.random.PRNGKey(0)
    k_x, k_w, k_b = jax.random.split(key, 3)

    # Small shapes consistent with Down(in_channels=4, out_channels=8, kernel_size=7)
    N, C_in, C_out, L, K = 2, 4, 8, 16, 7

    x = jax.random.normal(k_x, (N, C_in, L), dtype=jnp.float32)
    # PyTorch Conv1d parameter shapes: (C_out, C_in, K), (C_out,)
    weight = jax.random.normal(k_w, (C_out, C_in, K), dtype=jnp.float32) * 0.1
    bias = jax.random.normal(k_b, (C_out,), dtype=jnp.float32) * 0.1

    down = jax.jit(down_forward)
    y = down(x, weight, bias)
    y = jax.block_until_ready(y)

    # Reference (pure JAX conv) to validate semantics
    pad = (K - 1) // 2
    y_ref = lax.conv_general_dilated(
        x, weight, window_strides=(2,), padding=[(pad, pad)],
        dimension_numbers=("NCH", "OIH", "NCH"),
    ) + bias[None, :, None]

    assert y.shape == y_ref.shape, (y.shape, y_ref.shape)
    assert jnp.allclose(y, y_ref, atol=1e-5, rtol=1e-5), float(jnp.max(jnp.abs(y - y_ref)))

    print("KERNEL_OK")
</pallas_src>

<mosaic_0001>
module attributes {stable_mosaic.version = 11 : i64} {
  func.func @_down_conv_kernel(%arg0: i32, %arg1: i32, %arg2: memref<1x8x256xf32, #tpu.memory_space<vmem>>, %arg3: memref<4x8x8xf32, #tpu.memory_space<vmem>>, %arg4: memref<8x1xf32, #tpu.memory_space<vmem>>, %arg5: memref<1x8x128xf32, #tpu.memory_space<vmem>>) attributes {dimension_semantics = [#tpu.dimension_semantics<parallel>, #tpu.dimension_semantics<arbitrary>], iteration_bounds = array<i64: 2, 1>, scalar_prefetch = 0 : i64, scratch_operands = 0 : i64, tpu.core_type = #tpu.core_type<tc>, window_params = [{transform_indices = @transform_0, window_bounds = array<i64: 1, 8, 256>}, {pipeline_mode = #tpu.pipeline_mode<synchronous>, transform_indices = @transform_1, window_bounds = array<i64: 4, 8, 8>}, {pipeline_mode = #tpu.pipeline_mode<synchronous>, transform_indices = @transform_2, window_bounds = array<i64: 8, 1>}, {transform_indices = @transform_3, window_bounds = array<i64: 1, 8, 128>}]} {
    %c128_i32 = arith.constant 128 : i32
    %0 = arith.muli %arg1, %c128_i32 : i32
    %1 = tpu.assume_multiple %0, 128 : i32
    %c0 = arith.constant 0 : index
    %c0_0 = arith.constant 0 : index
    %2 = arith.index_cast %1 : i32 to index
    %3 = vector.load %arg2[%c0, %c0_0, %2] : memref<1x8x256xf32, #tpu.memory_space<vmem>>, vector<1x8x256xf32>
    %4 = vector.shape_cast %3 : vector<1x8x256xf32> to vector<8x256xf32>
    %cst = arith.constant 0.000000e+00 : f32
    %5 = vector.broadcast %cst : f32 to vector<8x128xf32>
    %6 = vector.extract_strided_slice %4 {offsets = [0, 0], sizes = [8, 128], strides = [1, 1]} : vector<8x256xf32> to vector<8x128xf32>
    %c0_1 = arith.constant 0 : index
    %c0_2 = arith.constant 0 : index
    %c0_3 = arith.constant 0 : index
    %7 = vector.load %arg3[%c0_1, %c0_2, %c0_3] : memref<4x8x8xf32, #tpu.memory_space<vmem>>, vector<1x8x8xf32>
    %8 = vector.shape_cast %7 : vector<1x8x8xf32> to vector<8x8xf32>
    %cst_4 = arith.constant dense<0.000000e+00> : vector<8x128xf32>
    %9 = tpu.matmul %8, %6, %cst_4 {dimension_numbers = #tpu.dot_dimension_numbers<[1], [0], [0], [1], [0, 0, 1, 1], [], []>} : vector<8x8xf32>, vector<8x128xf32>, vector<8x128xf32> -> vector<8x128xf32>
    %10 = arith.addf %5, %9 : vector<8x128xf32>
    %c255_i32 = arith.constant 255 : i32
    %11 = tpu.dynamic_rotate %4 by %c255_i32 dim 1 : vector<8x256xf32>, i32 -> vector<8x256xf32>
    %12 = vector.extract_strided_slice %11 {offsets = [0, 0], sizes = [8, 128], strides = [1, 1]} : vector<8x256xf32> to vector<8x128xf32>
    %c1 = arith.constant 1 : index
    %c0_5 = arith.constant 0 : index
    %c0_6 = arith.constant 0 : index
    %13 = vector.load %arg3[%c1, %c0_5, %c0_6] : memref<4x8x8xf32, #tpu.memory_space<vmem>>, vector<1x8x8xf32>
    %14 = vector.shape_cast %13 : vector<1x8x8xf32> to vector<8x8xf32>
    %cst_7 = arith.constant dense<0.000000e+00> : vector<8x128xf32>
    %15 = tpu.matmul %14, %12, %cst_7 {dimension_numbers = #tpu.dot_dimension_numbers<[1], [0], [0], [1], [0, 0, 1, 1], [], []>} : vector<8x8xf32>, vector<8x128xf32>, vector<8x128xf32> -> vector<8x128xf32>
    %16 = arith.addf %10, %15 : vector<8x128xf32>
    %c254_i32 = arith.constant 254 : i32
    %17 = tpu.dynamic_rotate %4 by %c254_i32 dim 1 : vector<8x256xf32>, i32 -> vector<8x256xf32>
    %18 = vector.extract_strided_slice %17 {offsets = [0, 0], sizes = [8, 128], strides = [1, 1]} : vector<8x256xf32> to vector<8x128xf32>
    %c2 = arith.constant 2 : index
    %c0_8 = arith.constant 0 : index
    %c0_9 = arith.constant 0 : index
    %19 = vector.load %arg3[%c2, %c0_8, %c0_9] : memref<4x8x8xf32, #tpu.memory_space<vmem>>, vector<1x8x8xf32>
    %20 = vector.shape_cast %19 : vector<1x8x8xf32> to vector<8x8xf32>
    %cst_10 = arith.constant dense<0.000000e+00> : vector<8x128xf32>
    %21 = tpu.matmul %20, %18, %cst_10 {dimension_numbers = #tpu.dot_dimension_numbers<[1], [0], [0], [1], [0, 0, 1, 1], [], []>} : vector<8x8xf32>, vector<8x128xf32>, vector<8x128xf32> -> vector<8x128xf32>
    %22 = arith.addf %16, %21 : vector<8x128xf32>
    %c253_i32 = arith.constant 253 : i32
    %23 = tpu.dynamic_rotate %4 by %c253_i32 dim 1 : vector<8x256xf32>, i32 -> vector<8x256xf32>
    %24 = vector.extract_strided_slice %23 {offsets = [0, 0], sizes = [8, 128], strides = [1, 1]} : vector<8x256xf32> to vector<8x128xf32>
    %c3 = arith.constant 3 : index
    %c0_11 = arith.constant 0 : index
    %c0_12 = arith.constant 0 : index
    %25 = vector.load %arg3[%c3, %c0_11, %c0_12] : memref<4x8x8xf32, #tpu.memory_space<vmem>>, vector<1x8x8xf32>
    %26 = vector.shape_cast %25 : vector<1x8x8xf32> to vector<8x8xf32>
    %cst_13 = arith.constant dense<0.000000e+00> : vector<8x128xf32>
    %27 = tpu.matmul %26, %24, %cst_13 {dimension_numbers = #tpu.dot_dimension_numbers<[1], [0], [0], [1], [0, 0, 1, 1], [], []>} : vector<8x8xf32>, vector<8x128xf32>, vector<8x128xf32> -> vector<8x128xf32>
    %28 = arith.addf %22, %27 : vector<8x128xf32>
    %c0_14 = arith.constant 0 : index
    %c0_15 = arith.constant 0 : index
    %29 = vector.load %arg4[%c0_14, %c0_15] : memref<8x1xf32, #tpu.memory_space<vmem>>, vector<8x1xf32>
    %30 = vector.broadcast %29 : vector<8x1xf32> to vector<8x128xf32>
    %31 = arith.addf %28, %30 : vector<8x128xf32>
    %c0_16 = arith.constant 0 : index
    %c0_17 = arith.constant 0 : index
    %c0_18 = arith.constant 0 : index
    %32 = vector.load %arg5[%c0_16, %c0_17, %c0_18] : memref<1x8x128xf32, #tpu.memory_space<vmem>>, vector<1x8x128xf32>
    %33 = vector.shape_cast %32 : vector<1x8x128xf32> to vector<8x128xf32>
    %34 = vector.shape_cast %31 : vector<8x128xf32> to vector<1x8x128xf32>
    tpu.vector_store %arg5[%c0_16, %c0_17, %c0_18], %34 {strides = array<i32>} : memref<1x8x128xf32, #tpu.memory_space<vmem>>, vector<1x8x128xf32>,
    return
  }
  func.func @transform_0(%arg0: i32, %arg1: i32) -> (i32, i32, i32) {
    %c0_i32 = arith.constant 0 : i32
    %c0_i32_0 = arith.constant 0 : i32
    %c0_i32_1 = arith.constant 0 : i32
    return %arg0, %c0_i32, %c0_i32_0 : i32, i32, i32
  }
  func.func @transform_1(%arg0: i32, %arg1: i32) -> (i32, i32, i32) {
    %c0_i32 = arith.constant 0 : i32
    %c0_i32_0 = arith.constant 0 : i32
    %c0_i32_1 = arith.constant 0 : i32
    %c0_i32_2 = arith.constant 0 : i32
    return %c0_i32, %c0_i32_0, %c0_i32_1 : i32, i32, i32
  }
  func.func @transform_2(%arg0: i32, %arg1: i32) -> (i32, i32) {
    %c0_i32 = arith.constant 0 : i32
    %c0_i32_0 = arith.constant 0 : i32
    %c0_i32_1 = arith.constant 0 : i32
    return %c0_i32, %c0_i32_0 : i32, i32
  }
  func.func @transform_3(%arg0: i32, %arg1: i32) -> (i32, i32, i32) {
    %c0_i32 = arith.constant 0 : i32
    %c0_i32_0 = arith.constant 0 : i32
    return %arg0, %c0_i32, %arg1 : i32, i32, i32
  }
}

</mosaic_0001>

<llo_original>
// kernel: down_forward.1
$region0: #{down_forward.1}
  #allocation0 [shape = 'u32[]', space=smem, size = 0x4, offset = 0x4, fixed_abs, tag = 'smem constant byte address 0x4 - core index']
  #allocation1 [shape = 'u32[144,128]{1,0:T(1,128)}', space=vmem, size = 0x12000, scoped, tag = 'internal scratch']
  %s0 = inlined_call_operand.vmem [shape: f32[2,8,256], index: 0, kind: input, shape index: {}]
  %s1 = inlined_call_operand.vmem [shape: f32[4,8,8], index: 1, kind: input, shape index: {}]
  %s2 = inlined_call_operand.vmem [shape: f32[8,1], index: 2, kind: input, shape index: {}]
  %s3 = inlined_call_operand.hbm [shape: f32[2,8,128], index: 3, kind: output, shape index: {}]
  %s4 = sld [smem:[#allocation0]]
  $region45: #{down_forward.1} parent=0
    _
  %s6 = ssub.s32 1, %s4
  %s7 = scalar_select 0, %s6, %s4
  $region1: #{down_forward.1} parent=0
    #allocation2 [shape = 'u8[8192]{0}', space=vmem, size = 0x2000, scoped, tag = 'output window, operand 0']
    #allocation3 [shape = 's32[2]{0}', space=sflag, size = 0x8, scoped, tag = 'scoped memory for down_forward.1']
    %8 = vsyncpa [#allocation3], 0
    %s9 = scalar_lea.sflag [#allocation3], 1
    %10 = vsyncpa %s9, 0
    loop: start=0, step=1, limit=4
    $region2: #{down_forward.1} parent=1 // loop_pre_header
      _
    $region3: #{down_forward.1} parent=1 // loop_header
      %s12 = sphi 0, %s16
      %p13 = scmp.ge.s32.totalorder %s12, 4
      %s19 = sphi 0, %s31
      %s20 = sphi 0, %s27
      %s21 = sphi 0, %s19
      %s22 = sphi 0, %s20
      %s23 = sphi 0, %s21
      %s24 = sphi 0, %s22
      %s34 = sphi 0, %s36
      %s37 = sphi 0, %s34
      %s38 = sphi 0, %s37
      %s54 = sphi 0, %s38
      %s58 = sphi 0, %s58
      %s60 = sphi 0, %s58
      %s61 = sphi 0, %s60
      %s75 = sphi 0, %s61
      %s79 = sphi 0, %s79
      %s81 = sphi 0, %s79
      %s82 = sphi 0, %s81
      %s96 = sphi 0, %s82
      %s104 = sphi 0, %s106
      %s107 = sphi 0, %s104
      %s108 = sphi 0, %s107
      %s124 = sphi 0, %s108
    $region4: #{down_forward.1} parent=1 // loop_header_branch
      %15 = sbr.rel (%p13) target = $region8
    $region5: #{down_forward.1} parent=1 // loop_body
      %s17 = ssub.s32 %s12, 1
      %s18 = ssub.s32 %s12, 2
      %s25 = sadd.s32 1, %s20
      %p26 = scmp.ge.s32.totalorder %s25, 1
      %s27 = scalar_select %p26, 0, %s25
      %s28 = sadd.s32 1, %s19
      %s29 = scalar_select %p26, %s28, %s19
      %p30 = scmp.ge.s32.totalorder %s29, 2
      %s31 = scalar_select %p30, 0, %s29
      %s32 = ssub.s32 %s19, %s31
      %p33 = scmp.eq.s32.totalorder %s32, 0
      %s35 = sadd.s32 %s34, 1
      %s36 = scalar_select %p33, %s34, %s35
      %p39 = pneg %p33
      %p40 = scmp.eq.s32.totalorder %s12, 1
      %p41 = por %p39, %p40
      %p42 = scmp.ne.s32.totalorder %s34, %s37
      %p43 = scmp.eq.s32.totalorder %s12, 0
      %p44 = por %p42, %p43
      %p45 = scmp.ne.s32.totalorder %s34, %s37
      %p46 = scmp.eq.s32.totalorder %s17, 1
      %p47 = por %p45, %p46
      %p48 = scmp.ne.s32.totalorder %s37, %s38
      %p49 = scmp.eq.s32.totalorder %s17, 0
      %p50 = por %p48, %p49
      %p51 = scmp.ne.s32.totalorder %s37, %s38
      %p52 = scmp.eq.s32.totalorder %s18, 1
      %p53 = por %p51, %p52
      %p55 = scmp.ne.s32.totalorder %s38, %s54
      %p56 = scmp.eq.s32.totalorder %s18, 0
      %p57 = por %p55, %p56
      %s59 = sadd.s32 %s58, 1
      %p62 = scmp.eq.s32.totalorder %s12, 1
      %p63 = scmp.ne.s32.totalorder %s58, %s60
      %p64 = scmp.eq.s32.totalorder %s12, 0
      %p65 = por %p63, %p64
      %p66 = scmp.ne.s32.totalorder %s58, %s60
      %p67 = scmp.eq.s32.totalorder %s17, 1
      %p68 = por %p66, %p67
      %p69 = scmp.ne.s32.totalorder %s60, %s61
      %p70 = scmp.eq.s32.totalorder %s17, 0
      %p71 = por %p69, %p70
      %p72 = scmp.ne.s32.totalorder %s60, %s61
      %p73 = scmp.eq.s32.totalorder %s18, 1
      %p74 = por %p72, %p73
      %p76 = scmp.ne.s32.totalorder %s61, %s75
      %p77 = scmp.eq.s32.totalorder %s18, 0
      %p78 = por %p76, %p77
      %s80 = sadd.s32 %s79, 1
      %p83 = scmp.eq.s32.totalorder %s12, 1
      %p84 = scmp.ne.s32.totalorder %s79, %s81
      %p85 = scmp.eq.s32.totalorder %s12, 0
      %p86 = por %p84, %p85
      %p87 = scmp.ne.s32.totalorder %s79, %s81
      %p88 = scmp.eq.s32.totalorder %s17, 1
      %p89 = por %p87, %p88
      %p90 = scmp.ne.s32.totalorder %s81, %s82
      %p91 = scmp.eq.s32.totalorder %s17, 0
      %p92 = por %p90, %p91
      %p93 = scmp.ne.s32.totalorder %s81, %s82
      %p94 = scmp.eq.s32.totalorder %s18, 1
      %p95 = por %p93, %p94
      %p97 = scmp.ne.s32.totalorder %s82, %s96
      %p98 = scmp.eq.s32.totalorder %s18, 0
      %p99 = por %p97, %p98
      %s100 = ssub.s32 %s19, %s31
      %s101 = ssub.s32 %s20, %s27
      %s102 = sor.u32 %s100, %s101
      %p103 = scmp.eq.s32.totalorder %s102, 0
      %s105 = sadd.s32 %s104, 1
      %s106 = scalar_select %p103, %s104, %s105
      %p109 = pneg %p103
      %p110 = scmp.eq.s32.totalorder %s12, 1
      %p111 = por %p109, %p110
      %p112 = scmp.ne.s32.totalorder %s104, %s107
      %p113 = scmp.eq.s32.totalorder %s12, 0
      %p114 = por %p112, %p113
      %p115 = scmp.ne.s32.totalorder %s104, %s107
      %p116 = scmp.eq.s32.totalorder %s17, 1
      %p117 = por %p115, %p116
      %p118 = scmp.ne.s32.totalorder %s107, %s108
      %p119 = scmp.eq.s32.totalorder %s17, 0
      %p120 = por %p118, %p119
      %p121 = scmp.ne.s32.totalorder %s107, %s108
      %p122 = scmp.eq.s32.totalorder %s18, 1
      %p123 = por %p121, %p122
      %p125 = scmp.ne.s32.totalorder %s108, %s124
      %p126 = scmp.eq.s32.totalorder %s18, 0
      %p127 = por %p125, %p126
      %p128 = scmp.le.s32.totalorder 1, %s12
      %p129 = scmp.lt.s32.totalorder %s12, 3
      %p130 = pnand %p128, %p129
      %p131 = pneg %p130
      // Predicated region
      $region9: #{down_forward.1} parent=5 // pred_check
        _
      $region10: #{down_forward.1} parent=5 // pred_check_branch
        %133 = sbr.rel (%p130) target = $region12
      $region11: #{down_forward.1} parent=5 // pred_region
        %s134 = ssub.s32 %s12, 1
        // Predicated region
        $region13: #{down_forward.1} parent=11 // pred_check
          %p135 = pneg %p71
        $region14: #{down_forward.1} parent=11 // pred_check_branch
          %137 = sbr.rel (%p135) target = $region16
        $region15: #{down_forward.1} parent=11 // pred_region
          _
        $region16: #{down_forward.1} parent=11 // pred_fallthru
          _
        // Predicated region
        $region17: #{down_forward.1} parent=11 // pred_check
          %p138 = pneg %p92
        $region18: #{down_forward.1} parent=11 // pred_check_branch
          %140 = sbr.rel (%p138) target = $region20
        $region19: #{down_forward.1} parent=11 // pred_region
          _
        $region20: #{down_forward.1} parent=11 // pred_fallthru
          _
      $region12: #{down_forward.1} parent=5 // pred_fallthru
        _
      %p141 = scmp.lt.s32.totalorder %s12, 2
      // Predicated region
      $region21: #{down_forward.1} parent=5 // pred_check
        %p142 = pneg %p141
      $region22: #{down_forward.1} parent=5 // pred_check_branch
        %144 = sbr.rel (%p142) target = $region24
      $region23: #{down_forward.1} parent=5 // pred_region
        // Predicated region
        $region25: #{down_forward.1} parent=23 // pred_check
          %p145 = pneg %p44
        $region26: #{down_forward.1} parent=23 // pred_check_branch
          %147 = sbr.rel (%p145) target = $region28
        $region27: #{down_forward.1} parent=23 // pred_region
          %p148 = scmp.lt.s32.totalorder %s19, 1
          %s149 = scalar_select %p148, %s19, 1
          %s150 = smul.addr %s149, 2
          %s151 = smul.addr %s150, 8
          %s152 = scalar_lea.vmem %s0, %s151
        $region28: #{down_forward.1} parent=23 // pred_fallthru
          _
      $region24: #{down_forward.1} parent=5 // pred_fallthru
        _
      %p153 = scmp.le.s32.totalorder 1, %s12
      %p154 = scmp.lt.s32.totalorder %s12, 3
      %p155 = pnand %p153, %p154
      %p156 = pneg %p155
      // Predicated region
      $region29: #{down_forward.1} parent=5 // pred_check
        _
      $region30: #{down_forward.1} parent=5 // pred_check_branch
        %158 = sbr.rel (%p155) target = $region32
      $region31: #{down_forward.1} parent=5 // pred_region
        %s159 = ssub.s32 %s12, 1
        %p160 = scmp.lt.s32.totalorder %s21, 1
        %s161 = scalar_select %p160, %s21, 1
        %s162 = smul.addr %s161, 2
        %s163 = smul.addr %s162, 8
        %s164 = scalar_lea.vmem %s0, %s163
        %p165 = pneg %p50
        %p166 = pneg %p47
        %p167 = pneg %p71
        %p168 = pneg %p68
        %p169 = pneg %p92
        %p170 = pneg %p89
        %p171 = pneg %p120
        %p172 = pneg %p117
        %s173 = sand.u32 %s107, 1
        %s174 = scalar_lea.sflag [#allocation3], %s173
        %s175 = sand.u32 %s107, 1
        %s176 = smul.addr %s175, 8
        %s177 = scalar_lea.vmem [#allocation2], %s176
        %p178 = scmp.lt.s32.totalorder %s21, 1
        %s179 = scalar_select %p178, %s21, 1
        %s180 = smul.addr %s179, 2
        %s181 = smul.addr %s180, 8
        %s182 = scalar_lea.vmem %s0, %s181
        %s183 = smul.u32 %s22, 128
        %s184 = sshra.s32 %s183, 7
        %s185 = sand.u32 %s183, 127
        %s186 = smul.addr %s184, 8
        %s187 = scalar_lea.vmem %s182, %s186
        %v188 = vld [vmem:[%s187] sm:$0xff]
        %v189 = vld [vmem:[%s187 + $0x8] sm:$0xff]
        %v190 = vld [vmem:[%s1] sm:$0xff]
        %191 = vrot.lane.b32.xlu0 %v188, 127
        %v192 = vpop.permute.xlu0 %191
        %193 = vrot.lane.b32.xlu0 %v189, 127
        %v194 = vpop.permute.xlu0 %193
        %v195 = vlaneseq
        %v196 = vand.u32 %v195, 127
        %vm197 = vcmp.lt.s32.totalorder %v196, 127
        %v198 = vsel %vm197, %v192, %v194
        %s199 = scalar_lea.vmem %s1, 8
        %v200 = vld [vmem:[%s199] sm:$0xff]
        %vm201 = vcmask 64512
        %v203 = vsel %vm201, %v200, 0
        %205 = vmatprep.subr.mxu0 0.0
        %206 = vmatpush1.msra.mxu0 %v198
        %207 = vmatprep.subr.mxu0 0.0
        %208 = vmatpush1.msra.mxu0 0.0
        %209 = vmatprep.subr.mxu0 0.0
        %210 = vmatpush1.msra.mxu0 0.0
        %211 = vmatprep.subr.mxu0 0.0
        %212 = vmatpush1.msra.mxu0 0.0
        %213 = vmatprep.subr.mxu0 0.0
        %214 = vmatpush1.msra.mxu0 0.0
        %215 = vmatprep.subr.mxu0 0.0
        %216 = vmatpush1.msra.mxu0 0.0
        %217 = vmatprep.subr.mxu0 0.0
        %218 = vmatpush1.msra.mxu0 0.0
        %219 = vmatprep.subr.mxu0 0.0
        %220 = vmatpush1.msra.mxu0 0.0
        %221 = vmatprep.subr.mxu0 0.0
        %222 = vmatpush1.msra.mxu0 0.0
        %223 = vmatprep.subr.mxu0 0.0
        %224 = vmatpush1.msra.mxu0 0.0
        %225 = vmatprep.subr.mxu0 0.0
        %226 = vmatpush1.msra.mxu0 0.0
        %227 = vmatprep.subr.mxu0 0.0
        %228 = vmatpush1.msra.mxu0 0.0
        %229 = vmatprep.subr.mxu0 0.0
        %230 = vmatpush1.msra.mxu0 0.0
        %231 = vmatprep.subr.mxu0 0.0
        %232 = vmatpush1.msra.mxu0 0.0
        %233 = vmatprep.subr.mxu0 0.0
        %234 = vmatpush1.msra.mxu0 0.0
        %235 = vmatprep.subr.mxu0 0.0
        %236 = vmatpush1.msra.mxu0 0.0
        %237 = vmatprep.subr.mxu0 0.0
        %238 = vmatpush1.msra.mxu0 0.0
        %239 = vmatprep.subr.mxu0 0.0
        %240 = vmatpush1.msra.mxu0 0.0
        %241 = vmatprep.subr.mxu0 0.0
        %242 = vmatpush1.msra.mxu0 0.0
        %243 = vmatprep.subr.mxu0 0.0
        %244 = vmatpush1.msra.mxu0 0.0
        %245 = vmatprep.subr.mxu0 0.0
        %246 = vmatpush1.msra.mxu0 0.0
        %247 = vmatprep.subr.mxu0 0.0
        %248 = vmatpush1.msra.mxu0 0.0
        %249 = vmatprep.subr.mxu0 0.0
        %250 = vmatpush1.msra.mxu0 0.0
        %251 = vmatprep.subr.mxu0 0.0
        %252 = vmatpush1.msra.mxu0 0.0
        %253 = vmatprep.subr.mxu0 0.0
        %254 = vmatpush1.msra.mxu0 0.0
        %255 = vmatprep.subr.mxu0 0.0
        %256 = vmatpush1.msra.mxu0 0.0
        %257 = vmatprep.subr.mxu0 0.0
        %258 = vmatpush1.msra.mxu0 0.0
        %259 = vmatprep.subr.mxu0 0.0
        %260 = vmatpush1.msra.mxu0 0.0
        %261 = vmatprep.subr.mxu0 0.0
        %262 = vmatpush1.msra.mxu0 0.0
        %263 = vmatprep.subr.mxu0 0.0
        %264 = vmatpush1.msra.mxu0 0.0
        %265 = vmatprep.subr.mxu0 0.0
        %266 = vmatpush1.msra.mxu0 0.0
        %267 = vmatprep.subr.mxu0 0.0
        %268 = vmatpush1.msra.mxu0 0.0
        %269 = vmatprep.mubr.f32.mxu0 0.0
        %270 = vmatmul.mubr.f32.gmra.mrb[0].mxu0 %v203
        %v271 = vpop.f32.mrb[0].mxu0
        %v272 = vadd.f32 0.0, %v271
        %v273 = vpop.f32.mrb[0].mxu0
        %274 = vdwg.mxu0
        %v276 = vsel %vm201, %v190, 0
        %278 = vmatprep.subr.mxu0 0.0
        %279 = vmatpush1.msra.mxu0 %v188
        %280 = vmatprep.subr.mxu0 0.0
        %281 = vmatpush1.msra.mxu0 0.0
        %282 = vmatprep.subr.mxu0 0.0
        %283 = vmatpush1.msra.mxu0 0.0
        %284 = vmatprep.subr.mxu0 0.0
        %285 = vmatpush1.msra.mxu0 0.0
        %286 = vmatprep.subr.mxu0 0.0
        %287 = vmatpush1.msra.mxu0 0.0
        %288 = vmatprep.subr.mxu0 0.0
        %289 = vmatpush1.msra.mxu0 0.0
        %290 = vmatprep.subr.mxu0 0.0
        %291 = vmatpush1.msra.mxu0 0.0
        %292 = vmatprep.subr.mxu0 0.0
        %293 = vmatpush1.msra.mxu0 0.0
        %294 = vmatprep.subr.mxu0 0.0
        %295 = vmatpush1.msra.mxu0 0.0
        %296 = vmatprep.subr.mxu0 0.0
        %297 = vmatpush1.msra.mxu0 0.0
        %298 = vmatprep.subr.mxu0 0.0
        %299 = vmatpush1.msra.mxu0 0.0
        %300 = vmatprep.subr.mxu0 0.0
        %301 = vmatpush1.msra.mxu0 0.0
        %302 = vmatprep.subr.mxu0 0.0
        %303 = vmatpush1.msra.mxu0 0.0
        %304 = vmatprep.subr.mxu0 0.0
        %305 = vmatpush1.msra.mxu0 0.0
        %306 = vmatprep.subr.mxu0 0.0
        %307 = vmatpush1.msra.mxu0 0.0
        %308 = vmatprep.subr.mxu0 0.0
        %309 = vmatpush1.msra.mxu0 0.0
        %310 = vmatprep.subr.mxu0 0.0
        %311 = vmatpush1.msra.mxu0 0.0
        %312 = vmatprep.subr.mxu0 0.0
        %313 = vmatpush1.msra.mxu0 0.0
        %314 = vmatprep.subr.mxu0 0.0
        %315 = vmatpush1.msra.mxu0 0.0
        %316 = vmatprep.subr.mxu0 0.0
        %317 = vmatpush1.msra.mxu0 0.0
        %318 = vmatprep.subr.mxu0 0.0
        %319 = vmatpush1.msra.mxu0 0.0
        %320 = vmatprep.subr.mxu0 0.0
        %321 = vmatpush1.msra.mxu0 0.0
        %322 = vmatprep.subr.mxu0 0.0
        %323 = vmatpush1.msra.mxu0 0.0
        %324 = vmatprep.subr.mxu0 0.0
        %325 = vmatpush1.msra.mxu0 0.0
        %326 = vmatprep.subr.mxu0 0.0
        %327 = vmatpush1.msra.mxu0 0.0
        %328 = vmatprep.subr.mxu0 0.0
        %329 = vmatpush1.msra.mxu0 0.0
        %330 = vmatprep.subr.mxu0 0.0
        %331 = vmatpush1.msra.mxu0 0.0
        %332 = vmatprep.subr.mxu0 0.0
        %333 = vmatpush1.msra.mxu0 0.0
        %334 = vmatprep.subr.mxu0 0.0
        %335 = vmatpush1.msra.mxu0 0.0
        %336 = vmatprep.subr.mxu0 0.0
        %337 = vmatpush1.msra.mxu0 0.0
        %338 = vmatprep.subr.mxu0 0.0
        %339 = vmatpush1.msra.mxu0 0.0
        %340 = vmatprep.subr.mxu0 0.0
        %341 = vmatpush1.msra.mxu0 0.0
        %342 = vmatprep.mubr.f32.mxu0 0.0
        %343 = vmatmul.mubr.f32.gmra.mrb[0].mxu0 %v276
        %v344 = vpop.f32.mrb[0].mxu0
        %v345 = vadd.f32 %v272, %v344
        %v346 = vpop.f32.mrb[0].mxu0
        %347 = vdwg.mxu0
        %348 = vrot.lane.b32.xlu0 %v188, 126
        %v349 = vpop.permute.xlu0 %348
        %350 = vrot.lane.b32.xlu0 %v189, 126
        %v351 = vpop.permute.xlu0 %350
        %vm352 = vcmp.lt.s32.totalorder %v196, 126
        %v353 = vsel %vm352, %v349, %v351
        %s354 = scalar_lea.vmem %s1, 16
        %v355 = vld [vmem:[%s354] sm:$0xff]
        %v357 = vsel %vm201, %v355, 0
        %359 = vmatprep.subr.mxu0 0.0
        %360 = vmatpush1.msra.mxu0 %v353
        %361 = vmatprep.subr.mxu0 0.0
        %362 = vmatpush1.msra.mxu0 0.0
        %363 = vmatprep.subr.mxu0 0.0
        %364 = vmatpush1.msra.mxu0 0.0
        %365 = vmatprep.subr.mxu0 0.0
        %366 = vmatpush1.msra.mxu0 0.0
        %367 = vmatprep.subr.mxu0 0.0
        %368 = vmatpush1.msra.mxu0 0.0
        %369 = vmatprep.subr.mxu0 0.0
        %370 = vmatpush1.msra.mxu0 0.0
        %371 = vmatprep.subr.mxu0 0.0
        %372 = vmatpush1.msra.mxu0 0.0
        %373 = vmatprep.subr.mxu0 0.0
        %374 = vmatpush1.msra.mxu0 0.0
        %375 = vmatprep.subr.mxu0 0.0
        %376 = vmatpush1.msra.mxu0 0.0
        %377 = vmatprep.subr.mxu0 0.0
        %378 = vmatpush1.msra.mxu0 0.0
        %379 = vmatprep.subr.mxu0 0.0
        %380 = vmatpush1.msra.mxu0 0.0
        %381 = vmatprep.subr.mxu0 0.0
        %382 = vmatpush1.msra.mxu0 0.0
        %383 = vmatprep.subr.mxu0 0.0
        %384 = vmatpush1.msra.mxu0 0.0
        %385 = vmatprep.subr.mxu0 0.0
        %386 = vmatpush1.msra.mxu0 0.0
        %387 = vmatprep.subr.mxu0 0.0
        %388 = vmatpush1.msra.mxu0 0.0
        %389 = vmatprep.subr.mxu0 0.0
        %390 = vmatpush1.msra.mxu0 0.0
        %391 = vmatprep.subr.mxu0 0.0
        %392 = vmatpush1.msra.mxu0 0.0
        %393 = vmatprep.subr.mxu0 0.0
        %394 = vmatpush1.msra.mxu0 0.0
        %395 = vmatprep.subr.mxu0 0.0
        %396 = vmatpush1.msra.mxu0 0.0
        %397 = vmatprep.subr.mxu0 0.0
        %398 = vmatpush1.msra.mxu0 0.0
        %399 = vmatprep.subr.mxu0 0.0
        %400 = vmatpush1.msra.mxu0 0.0
        %401 = vmatprep.subr.mxu0 0.0
        %402 = vmatpush1.msra.mxu0 0.0
        %403 = vmatprep.subr.mxu0 0.0
        %404 = vmatpush1.msra.mxu0 0.0
        %405 = vmatprep.subr.mxu0 0.0
        %406 = vmatpush1.msra.mxu0 0.0
        %407 = vmatprep.subr.mxu0 0.0
        %408 = vmatpush1.msra.mxu0 0.0
        %409 = vmatprep.subr.mxu0 0.0
        %410 = vmatpush1.msra.mxu0 0.0
        %411 = vmatprep.subr.mxu0 0.0
        %412 = vmatpush1.msra.mxu0 0.0
        %413 = vmatprep.subr.mxu0 0.0
        %414 = vmatpush1.msra.mxu0 0.0
        %415 = vmatprep.subr.mxu0 0.0
        %416 = vmatpush1.msra.mxu0 0.0
        %417 = vmatprep.subr.mxu0 0.0
        %418 = vmatpush1.msra.mxu0 0.0
        %419 = vmatprep.subr.mxu0 0.0
        %420 = vmatpush1.msra.mxu0 0.0
        %421 = vmatprep.subr.mxu0 0.0
        %422 = vmatpush1.msra.mxu0 0.0
        %423 = vmatprep.mubr.f32.mxu0 0.0
        %424 = vmatmul.mubr.f32.gmra.mrb[0].mxu0 %v357
        %v425 = vpop.f32.mrb[0].mxu0
        %v426 = vadd.f32 0.0, %v425
        %v427 = vpop.f32.mrb[0].mxu0
        %428 = vdwg.mxu0
        %v429 = vadd.f32 %v345, %v426
        %430 = vrot.lane.b32.xlu0 %v188, 125
        %v431 = vpop.permute.xlu0 %430
        %432 = vrot.lane.b32.xlu0 %v189, 125
        %v433 = vpop.permute.xlu0 %432
        %vm434 = vcmp.lt.s32.totalorder %v196, 125
        %v435 = vsel %vm434, %v431, %v433
        %s436 = scalar_lea.vmem %s1, 24
        %v437 = vld [vmem:[%s436] sm:$0xff]
        %v439 = vsel %vm201, %v437, 0
        %441 = vmatprep.subr.mxu0 0.0
        %442 = vmatpush1.msra.mxu0 %v435
        %443 = vmatprep.subr.mxu0 0.0
        %444 = vmatpush1.msra.mxu0 0.0
        %445 = vmatprep.subr.mxu0 0.0
        %446 = vmatpush1.msra.mxu0 0.0
        %447 = vmatprep.subr.mxu0 0.0
        %448 = vmatpush1.msra.mxu0 0.0
        %449 = vmatprep.subr.mxu0 0.0
        %450 = vmatpush1.msra.mxu0 0.0
        %451 = vmatprep.subr.mxu0 0.0
        %452 = vmatpush1.msra.mxu0 0.0
        %453 = vmatprep.subr.mxu0 0.0
        %454 = vmatpush1.msra.mxu0 0.0
        %455 = vmatprep.subr.mxu0 0.0
        %456 = vmatpush1.msra.mxu0 0.0
        %457 = vmatprep.subr.mxu0 0.0
        %458 = vmatpush1.msra.mxu0 0.0
        %459 = vmatprep.subr.mxu0 0.0
        %460 = vmatpush1.msra.mxu0 0.0
        %461 = vmatprep.subr.mxu0 0.0
        %462 = vmatpush1.msra.mxu0 0.0
        %463 = vmatprep.subr.mxu0 0.0
        %464 = vmatpush1.msra.mxu0 0.0
        %465 = vmatprep.subr.mxu0 0.0
        %466 = vmatpush1.msra.mxu0 0.0
        %467 = vmatprep.subr.mxu0 0.0
        %468 = vmatpush1.msra.mxu0 0.0
        %469 = vmatprep.subr.mxu0 0.0
        %470 = vmatpush1.msra.mxu0 0.0
        %471 = vmatprep.subr.mxu0 0.0
        %472 = vmatpush1.msra.mxu0 0.0
        %473 = vmatprep.subr.mxu0 0.0
        %474 = vmatpush1.msra.mxu0 0.0
        %475 = vmatprep.subr.mxu0 0.0
        %476 = vmatpush1.msra.mxu0 0.0
        %477 = vmatprep.subr.mxu0 0.0
        %478 = vmatpush1.msra.mxu0 0.0
        %479 = vmatprep.subr.mxu0 0.0
        %480 = vmatpush1.msra.mxu0 0.0
        %481 = vmatprep.subr.mxu0 0.0
        %482 = vmatpush1.msra.mxu0 0.0
        %483 = vmatprep.subr.mxu0 0.0
        %484 = vmatpush1.msra.mxu0 0.0
        %485 = vmatprep.subr.mxu0 0.0
        %486 = vmatpush1.msra.mxu0 0.0
        %487 = vmatprep.subr.mxu0 0.0
        %488 = vmatpush1.msra.mxu0 0.0
        %489 = vmatprep.subr.mxu0 0.0
        %490 = vmatpush1.msra.mxu0 0.0
        %491 = vmatprep.subr.mxu0 0.0
        %492 = vmatpush1.msra.mxu0 0.0
        %493 = vmatprep.subr.mxu0 0.0
        %494 = vmatpush1.msra.mxu0 0.0
        %495 = vmatprep.subr.mxu0 0.0
        %496 = vmatpush1.msra.mxu0 0.0
        %497 = vmatprep.subr.mxu0 0.0
        %498 = vmatpush1.msra.mxu0 0.0
        %499 = vmatprep.subr.mxu0 0.0
        %500 = vmatpush1.msra.mxu0 0.0
        %501 = vmatprep.subr.mxu0 0.0
        %502 = vmatpush1.msra.mxu0 0.0
        %503 = vmatprep.subr.mxu0 0.0
        %504 = vmatpush1.msra.mxu0 0.0
        %505 = vmatprep.mubr.f32.mxu0 0.0
        %506 = vmatmul.mubr.f32.gmra.mrb[0].mxu0 %v439
        %v507 = vpop.f32.mrb[0].mxu0
        %v508 = vadd.f32 0.0, %v507
        %v509 = vpop.f32.mrb[0].mxu0
        %510 = vdwg.mxu0
        %v511 = vadd.f32 %v429, %v508
        %v512 = vld [vmem:[%s2] sm:$0xff]
        %514 = vset.pattern.permute.xlu0 0
        %515 = vperm.xlu0 %514, %v512
        %v516 = vpop.permute.xlu0 %515
        %v518 = vadd.f32 %v511, %v516
        %519 = vst [vmem:[%s177] sm:$0xff] %v518
        %s520 = sand.u32 %s107, 1
        %s521 = scalar_lea.sflag [#allocation3], %s520
        %s522 = sand.u32 %s107, 1
        %s523 = smul.addr %s522, 8
        %s524 = scalar_lea.vmem [#allocation2], %s523
        // Predicated region
        $region33: #{down_forward.1} parent=31 // pred_check
          %p525 = pneg %p117
        $region34: #{down_forward.1} parent=31 // pred_check_branch
          %527 = sbr.rel (%p525) target = $region36
        $region35: #{down_forward.1} parent=31 // pred_region
          %s529 = ssub.s32 128, 128
          %530 = vsyncadd %s521, %s529
          %s531 = sadd.s32 %s22, %s21
          %s532 = smul.addr %s531, 128
          %s533 = scalar_lea.hbm %s3, %s532
          %s535 = sshll.u32 %s524, 4
          %s536 = int_to_ptr.vmem [resolvable:$true] %s535
          %538 = dma.vmem_to_hbm [thread:$0]  %s536, 128, %s533, %s521
        $region36: #{down_forward.1} parent=31 // pred_fallthru
          _
      $region32: #{down_forward.1} parent=5 // pred_fallthru
        _
      %p539 = scmp.le.s32.totalorder 2, %s12
      // Predicated region
      $region37: #{down_forward.1} parent=5 // pred_check
        %p540 = pneg %p539
      $region38: #{down_forward.1} parent=5 // pred_check_branch
        %542 = sbr.rel (%p540) target = $region40
      $region39: #{down_forward.1} parent=5 // pred_region
        %s543 = ssub.s32 %s12, 2
        // Predicated region
        $region41: #{down_forward.1} parent=39 // pred_check
          %p544 = pneg %p123
        $region42: #{down_forward.1} parent=39 // pred_check_branch
          %546 = sbr.rel (%p544) target = $region44
        $region43: #{down_forward.1} parent=39 // pred_region
          %s547 = sand.u32 %s108, 1
          %s548 = scalar_lea.sflag [#allocation3], %s547
          %s549 = sand.u32 %s108, 1
          %s550 = smul.addr %s549, 8
          %s551 = scalar_lea.vmem [#allocation2], %s550
          %552 = dma.done %s548, 128
        $region44: #{down_forward.1} parent=39 // pred_fallthru
          _
      $region40: #{down_forward.1} parent=5 // pred_fallthru
        _
    $region6: #{down_forward.1} parent=1 // loop_footer
      %s16 = sadd.s32 1, %s12
    $region7: #{down_forward.1} parent=1 // loop_footer_branch
      %11 = sbr.rel target = $region3
    $region8: #{down_forward.1} parent=1 // loop_exit
      _
    %553 = vsyncpa [#allocation3], 1
    %s554 = scalar_lea.sflag [#allocation3], 1
    %555 = vsyncpa %s554, 1

</llo_original>
